<compile_context>
chip_gen: v6e
topology: v6e:2x2x1
jax: 0.10.0
libtpu: 0.0.40
codegen_flags: <defaults>
</compile_context>

<pallas_src>
import jax
import jax.numpy as jnp
from jax.experimental import pallas as pl
from jax.experimental.pallas import tpu as pltpu

KH = KW = 5
PAD = 2
EPS = 1e-5


def _round_up(x, m):
    return (x + m - 1) // m * m


def _conv_pool_stats_kernel(p_ref, w_ref, pooled_ref, stats_ref):
    """Per pooled-row tile: conv (MXU) -> ReLU -> 2x2 avg-pool (VPU adds) + BN partials.

    p_ref     : (4, TMP, Kp) im2col patches; leading axis = 2x2 window position
    w_ref     : (Kp, Cp)     conv weight matrix (zero-padded, lane dense)
    pooled_ref: (TMP, Cp)    un-normalized pooled conv output for this tile
    stats_ref : (2, Cp)      row 0 = sum(pooled) over tile, row 1 = sum(y^2) over tile
    """
    w_mat = w_ref[...]
    cp = w_mat.shape[1]
    tmp_rows = p_ref.shape[1]

    pooled_acc = jnp.zeros((tmp_rows, cp), jnp.float32)
    sumsq_acc = jnp.zeros((1, cp), jnp.float32)
    for widx in range(p_ref.shape[0]):        # static unroll over the 2x2 window
        # Conv taps folded into K: one MXU matmul per window slab, f32 accumulate.
        y = jnp.dot(p_ref[widx], w_mat, preferred_element_type=jnp.float32)
        y = jnp.maximum(y, 0.0)               # ReLU (f32, VPU)
        pooled_acc = pooled_acc + y           # contiguous VPU adds == the 2x2 pool
        sumsq_acc = sumsq_acc + jnp.sum(y * y, axis=0, keepdims=True)

    pooled = pooled_acc * 0.25
    pooled_ref[...] = pooled
    # Per-tile BN partials (combined across tiles by a tiny XLA reduction).
    stats_ref[0:1, :] = jnp.sum(pooled, axis=0, keepdims=True)
    stats_ref[1:2, :] = sumsq_acc


def _bn_normalize_kernel(pooled_ref, ms_ref, out_ref):
    """(pooled - mean) * inv_std with global batch stats (gamma=1, beta=0)."""
    mean = ms_ref[0:1, :]
    inv_std = ms_ref[1:2, :]
    out_ref[...] = (pooled_ref[...] - mean) * inv_std


def conv_block5x5_forward(x_nchw, weight_oihw, pool_size=(2, 2), pool_type="avg",
                          mxu_dtype=jnp.bfloat16, tile_mp=32):
    """Matches ConvBlock5x5.forward(input) with its default pool args (NCHW in/out).

    mxu_dtype: conv-matmul operand dtype.  bf16 is the recommended feed on all TPU
    generations (f32 accumulation + f32 BN/VPU math either way); f32 is exact.
    tile_mp  : pooled rows per grid tile (multiple of 8, must divide N*Ho*Wo).
    """
    assert pool_type == "avg" and tuple(pool_size) == (2, 2)
    N, Cin, H, W = x_nchw.shape
    Cout = weight_oihw.shape[0]
    assert H % 2 == 0 and W % 2 == 0

    Ho, Wo = H // 2, W // 2
    MP = N * Ho * Wo                 # pooled rows
    M = 4 * MP                       # conv rows (= N*H*W)
    K = KH * KW * Cin
    Kp = _round_up(K, 128)           # lane-dense contraction dim
    Cp = _round_up(Cout, 128)        # lane-dense output channels

    assert MP % tile_mp == 0 and tile_mp % 8 == 0, (MP, tile_mp)
    num_tiles = MP // tile_mp

    # --- layout prep (cheap fused XLA): NCHW -> NHWC, SAME pad, im2col ---
    x_nhwc = jnp.transpose(x_nchw, (0, 2, 3, 1)).astype(jnp.float32)
    xp = jnp.pad(x_nhwc, ((0, 0), (PAD, PAD), (PAD, PAD), (0, 0)))
    cols = [xp[:, kh:kh + H, kw:kw + W, :] for kh in range(KH) for kw in range(KW)]
    taps = jnp.concatenate(cols, axis=-1)                     # (N, H, W, K)
    # Re-order rows so each 2x2 pooling window lives inside one row tile:
    # leading axis = window position (dh*2+dw), then flattened (n, ho, wo).
    taps = taps.reshape(N, Ho, 2, Wo, 2, K)
    taps = jnp.transpose(taps, (2, 4, 0, 1, 3, 5))             # (2, 2, N, Ho, Wo, K)
    patches = taps.reshape(4, MP, K)
    patches = jnp.pad(patches, ((0, 0), (0, 0), (0, Kp - K)))

    # Conv weight OIHW -> (KH, KW, Cin, Cout) -> (K, Cout), zero-pad K and Cout.
    w_hwio = jnp.transpose(weight_oihw, (2, 3, 1, 0)).astype(jnp.float32)
    w_mat = jnp.pad(w_hwio.reshape(K, Cout), ((0, Kp - K), (0, Cp - Cout)))

    # VMEM budget estimate (double-buffered blocks) with v7x (64 MiB) headroom.
    itemsize = jnp.dtype(mxu_dtype).itemsize
    vmem_bytes = (2 * 4 * tile_mp * Kp * itemsize     # patch tile, double-buffered
                  + 2 * Kp * Cp * itemsize            # weight block
                  + 2 * tile_mp * Cp * 4              # pooled output tile
                  + 2 * 2 * Cp * 4)                   # stats tile
    vmem_limit = int(min(max(4 * vmem_bytes, 8 << 20), 48 << 20))
    cparams = pltpu.CompilerParams(dimension_semantics=("parallel",),
                                   vmem_limit_bytes=vmem_limit)

    # --- pass 1: conv + ReLU + 2x2 avg-pool + per-tile BN partial stats ---
    pooled, stats = pl.pallas_call(
        _conv_pool_stats_kernel,
        out_shape=(jax.ShapeDtypeStruct((MP, Cp), jnp.float32),
                   jax.ShapeDtypeStruct((num_tiles, 2, Cp), jnp.float32)),
        grid=(num_tiles,),
        in_specs=[pl.BlockSpec((4, tile_mp, Kp), lambda i: (0, i, 0)),
                  pl.BlockSpec((Kp, Cp), lambda i: (0, 0))],
        out_specs=(pl.BlockSpec((tile_mp, Cp), lambda i: (i, 0)),
                   pl.BlockSpec((None, 2, Cp), lambda i: (i, 0, 0))),
        compiler_params=cparams,
    )(patches.astype(mxu_dtype), w_mat.astype(mxu_dtype))

    # Tiny cross-tile reduction in XLA.  The per-channel mean is recovered from
    # the pooled sums (non-overlapping full-coverage avg pool preserves the mean);
    # biased variance via E[y^2] - E[y]^2 in f32 (clamped at 0).
    sum_pooled = jnp.sum(stats[:, 0, :], axis=0)               # (Cp,)
    sum_sq = jnp.sum(stats[:, 1, :], axis=0)
    mean = sum_pooled / MP
    var = jnp.maximum(sum_sq / M - mean * mean, 0.0)
    inv_std = jax.lax.rsqrt(var + EPS)
    ms = jnp.stack([mean, inv_std], axis=0)                    # (2, Cp) f32

    # --- pass 2: apply the BN affine (gamma=1, beta=0) to the pooled tensor ---
    out2d = pl.pallas_call(
        _bn_normalize_kernel,
        out_shape=jax.ShapeDtypeStruct((MP, Cp), jnp.float32),
        grid=(num_tiles,),
        in_specs=[pl.BlockSpec((tile_mp, Cp), lambda i: (i, 0)),
                  pl.BlockSpec((2, Cp), lambda i: (0, 0))],
        out_specs=pl.BlockSpec((tile_mp, Cp), lambda i: (i, 0)),
        compiler_params=cparams,
    )(pooled, ms)

    # NOTE: a fused downstream consumer should take the lane-dense (MP, Cp) NHWC
    # slab directly; the PyTorch spec returns NCHW, so convert here for parity.
    out_nhwc = out2d.reshape(N, Ho, Wo, Cp)[..., :Cout]
    return jnp.transpose(out_nhwc, (0, 3, 1, 2))


def _reference(x_nchw, weight_oihw, operand_dtype=jnp.float32):
    """Pure-JAX reference with identical semantics (training-mode BN, gamma=1, beta=0)."""
    y = jax.lax.conv_general_dilated(
        x_nchw.astype(operand_dtype), weight_oihw.astype(operand_dtype),
        window_strides=(1, 1), padding=((PAD, PAD), (PAD, PAD)),
        dimension_numbers=("NCHW", "OIHW", "NCHW"),
        preferred_element_type=jnp.float32)
    y = jnp.maximum(y, 0.0)
    mean = jnp.mean(y, axis=(0, 2, 3), keepdims=True)
    var = jnp.mean(jnp.square(y - mean), axis=(0, 2, 3), keepdims=True)
    y = (y - mean) / jnp.sqrt(var + EPS)
    N, C, H, W = y.shape
    return y.reshape(N, C, H // 2, 2, W // 2, 2).mean(axis=(3, 5))


if __name__ == "__main__":
    # Small shapes consistent with the module: batch=2, in_channels=4,
    # out_channels=8, spatial 16x16  ->  MP=128 pooled rows, 4 grid tiles.
    N, Cin, Cout, H, W = 2, 4, 8, 16, 16

    key = jax.random.PRNGKey(0)
    kx, kw = jax.random.split(key)
    x = jax.random.normal(kx, (N, Cin, H, W), dtype=jnp.float32)

    # Deterministic xavier_uniform_ init for conv1.weight (bias=False); bn gamma=1,
    # beta=0 are implicit (identity affine) inside the kernel.
    fan_in = Cin * KH * KW
    fan_out = Cout * KH * KW
    bound = (6.0 / (fan_in + fan_out)) ** 0.5
    conv_weight = jax.random.uniform(kw, (Cout, Cin, KH, KW), jnp.float32,
                                     minval=-bound, maxval=bound)

    # --- exact f32 MXU-feed path: must match the f32 reference tightly ---
    out_f32 = jax.block_until_ready(
        conv_block5x5_forward(x, conv_weight, mxu_dtype=jnp.float32))
    ref_f32 = _reference(x, conv_weight)
    assert out_f32.shape == (N, Cout, H // 2, W // 2), out_f32.shape
    err_f32 = float(jnp.max(jnp.abs(out_f32 - ref_f32)))
    assert err_f32 < 1e-3, f"f32 path mismatch vs reference: {err_f32}"

    # --- bf16 MXU-feed path (recommended on v5e/v6e/v7x): operands in bf16,
    #     f32 accumulate, all BN/VPU math in f32. ---
    out_bf16 = jax.block_until_ready(
        conv_block5x5_forward(x, conv_weight, mxu_dtype=jnp.bfloat16))
    ref_bf16 = _reference(x, conv_weight, operand_dtype=jnp.bfloat16)
    err_bf16 = float(jnp.max(jnp.abs(out_bf16 - ref_bf16)))
    assert err_bf16 < 2e-2, f"bf16 path mismatch vs bf16 reference: {err_bf16}"
    err_mixed = float(jnp.max(jnp.abs(out_bf16 - ref_f32)))
    assert err_mixed < 1e-1, f"bf16 path mismatch vs f32 reference: {err_mixed}"

    print("KERNEL_OK")
</pallas_src>

<mosaic_0001>
module attributes {stable_mosaic.version = 11 : i64} {
  func.func @_conv_pool_stats_kernel(%arg0: i32, %arg1: memref<4x32x128xf32, #tpu.memory_space<vmem>>, %arg2: memref<128x128xf32, #tpu.memory_space<vmem>>, %arg3: memref<32x128xf32, #tpu.memory_space<vmem>>, %arg4: memref<1x2x128xf32, #tpu.memory_space<vmem>>) attributes {dimension_semantics = [#tpu.dimension_semantics<parallel>], iteration_bounds = array<i64: 4>, scalar_prefetch = 0 : i64, scratch_operands = 0 : i64, tpu.core_type = #tpu.core_type<tc>, window_params = [{transform_indices = @transform_0, window_bounds = array<i64: 4, 32, 128>}, {pipeline_mode = #tpu.pipeline_mode<synchronous>, transform_indices = @transform_1, window_bounds = array<i64: 128, 128>}, {transform_indices = @transform_2, window_bounds = array<i64: 32, 128>}, {transform_indices = @transform_3, window_bounds = array<i64: 1, 2, 128>}]} {
    %c0 = arith.constant 0 : index
    %c0_0 = arith.constant 0 : index
    %0 = vector.load %arg2[%c0, %c0_0] : memref<128x128xf32, #tpu.memory_space<vmem>>, vector<128x128xf32>
    %cst = arith.constant 0.000000e+00 : f32
    %1 = vector.broadcast %cst : f32 to vector<32x128xf32>
    %cst_1 = arith.constant 0.000000e+00 : f32
    %2 = vector.broadcast %cst_1 : f32 to vector<1x128xf32>
    %c0_2 = arith.constant 0 : index
    %c0_3 = arith.constant 0 : index
    %c0_4 = arith.constant 0 : index
    %3 = vector.load %arg1[%c0_2, %c0_3, %c0_4] : memref<4x32x128xf32, #tpu.memory_space<vmem>>, vector<1x32x128xf32>
    %4 = vector.shape_cast %3 : vector<1x32x128xf32> to vector<32x128xf32>
    %cst_5 = arith.constant dense<0.000000e+00> : vector<32x128xf32>
    %5 = tpu.matmul %4, %0, %cst_5 {dimension_numbers = #tpu.dot_dimension_numbers<[1], [0], [0], [1], [0, 0, 1, 1], [], []>} : vector<32x128xf32>, vector<128x128xf32>, vector<32x128xf32> -> vector<32x128xf32>
    %cst_6 = arith.constant 0.000000e+00 : f32
    %6 = vector.broadcast %cst_6 : f32 to vector<32x128xf32>
    %7 = arith.maximumf %5, %6 : vector<32x128xf32>
    %8 = arith.addf %1, %7 : vector<32x128xf32>
    %9 = arith.mulf %7, %7 : vector<32x128xf32>
    %cst_7 = arith.constant dense<0.000000e+00> : vector<128xf32>
    %10 = vector.multi_reduction <add>, %9, %cst_7 [0] : vector<32x128xf32> to vector<128xf32>
    %11 = vector.shape_cast %10 : vector<128xf32> to vector<1x128xf32>
    %12 = arith.addf %2, %11 : vector<1x128xf32>
    %c1 = arith.constant 1 : index
    %c0_8 = arith.constant 0 : index
    %c0_9 = arith.constant 0 : index
    %13 = vector.load %arg1[%c1, %c0_8, %c0_9] : memref<4x32x128xf32, #tpu.memory_space<vmem>>, vector<1x32x128xf32>
    %14 = vector.shape_cast %13 : vector<1x32x128xf32> to vector<32x128xf32>
    %cst_10 = arith.constant dense<0.000000e+00> : vector<32x128xf32>
    %15 = tpu.matmul %14, %0, %cst_10 {dimension_numbers = #tpu.dot_dimension_numbers<[1], [0], [0], [1], [0, 0, 1, 1], [], []>} : vector<32x128xf32>, vector<128x128xf32>, vector<32x128xf32> -> vector<32x128xf32>
    %cst_11 = arith.constant 0.000000e+00 : f32
    %16 = vector.broadcast %cst_11 : f32 to vector<32x128xf32>
    %17 = arith.maximumf %15, %16 : vector<32x128xf32>
    %18 = arith.addf %8, %17 : vector<32x128xf32>
    %19 = arith.mulf %17, %17 : vector<32x128xf32>
    %cst_12 = arith.constant dense<0.000000e+00> : vector<128xf32>
    %20 = vector.multi_reduction <add>, %19, %cst_12 [0] : vector<32x128xf32> to vector<128xf32>
    %21 = vector.shape_cast %20 : vector<128xf32> to vector<1x128xf32>
    %22 = arith.addf %12, %21 : vector<1x128xf32>
    %c2 = arith.constant 2 : index
    %c0_13 = arith.constant 0 : index
    %c0_14 = arith.constant 0 : index
    %23 = vector.load %arg1[%c2, %c0_13, %c0_14] : memref<4x32x128xf32, #tpu.memory_space<vmem>>, vector<1x32x128xf32>
    %24 = vector.shape_cast %23 : vector<1x32x128xf32> to vector<32x128xf32>
    %cst_15 = arith.constant dense<0.000000e+00> : vector<32x128xf32>
    %25 = tpu.matmul %24, %0, %cst_15 {dimension_numbers = #tpu.dot_dimension_numbers<[1], [0], [0], [1], [0, 0, 1, 1], [], []>} : vector<32x128xf32>, vector<128x128xf32>, vector<32x128xf32> -> vector<32x128xf32>
    %cst_16 = arith.constant 0.000000e+00 : f32
    %26 = vector.broadcast %cst_16 : f32 to vector<32x128xf32>
    %27 = arith.maximumf %25, %26 : vector<32x128xf32>
    %28 = arith.addf %18, %27 : vector<32x128xf32>
    %29 = arith.mulf %27, %27 : vector<32x128xf32>
    %cst_17 = arith.constant dense<0.000000e+00> : vector<128xf32>
    %30 = vector.multi_reduction <add>, %29, %cst_17 [0] : vector<32x128xf32> to vector<128xf32>
    %31 = vector.shape_cast %30 : vector<128xf32> to vector<1x128xf32>
    %32 = arith.addf %22, %31 : vector<1x128xf32>
    %c3 = arith.constant 3 : index
    %c0_18 = arith.constant 0 : index
    %c0_19 = arith.constant 0 : index
    %33 = vector.load %arg1[%c3, %c0_18, %c0_19] : memref<4x32x128xf32, #tpu.memory_space<vmem>>, vector<1x32x128xf32>
    %34 = vector.shape_cast %33 : vector<1x32x128xf32> to vector<32x128xf32>
    %cst_20 = arith.constant dense<0.000000e+00> : vector<32x128xf32>
    %35 = tpu.matmul %34, %0, %cst_20 {dimension_numbers = #tpu.dot_dimension_numbers<[1], [0], [0], [1], [0, 0, 1, 1], [], []>} : vector<32x128xf32>, vector<128x128xf32>, vector<32x128xf32> -> vector<32x128xf32>
    %cst_21 = arith.constant 0.000000e+00 : f32
    %36 = vector.broadcast %cst_21 : f32 to vector<32x128xf32>
    %37 = arith.maximumf %35, %36 : vector<32x128xf32>
    %38 = arith.addf %28, %37 : vector<32x128xf32>
    %39 = arith.mulf %37, %37 : vector<32x128xf32>
    %cst_22 = arith.constant dense<0.000000e+00> : vector<128xf32>
    %40 = vector.multi_reduction <add>, %39, %cst_22 [0] : vector<32x128xf32> to vector<128xf32>
    %41 = vector.shape_cast %40 : vector<128xf32> to vector<1x128xf32>
    %42 = arith.addf %32, %41 : vector<1x128xf32>
    %cst_23 = arith.constant 2.500000e-01 : f32
    %43 = vector.broadcast %cst_23 : f32 to vector<32x128xf32>
    %44 = arith.mulf %38, %43 : vector<32x128xf32>
    %c0_24 = arith.constant 0 : index
    %c0_25 = arith.constant 0 : index
    %45 = vector.load %arg3[%c0_24, %c0_25] : memref<32x128xf32, #tpu.memory_space<vmem>>, vector<32x128xf32>
    tpu.vector_store %arg3[%c0_24, %c0_25], %44 {strides = array<i32>} : memref<32x128xf32, #tpu.memory_space<vmem>>, vector<32x128xf32>,
    %cst_26 = arith.constant dense<0.000000e+00> : vector<128xf32>
    %46 = vector.multi_reduction <add>, %44, %cst_26 [0] : vector<32x128xf32> to vector<128xf32>
    %47 = vector.shape_cast %46 : vector<128xf32> to vector<1x128xf32>
    %c0_27 = arith.constant 0 : index
    %c0_28 = arith.constant 0 : index
    %c0_29 = arith.constant 0 : index
    %48 = vector.load %arg4[%c0_27, %c0_28, %c0_29] : memref<1x2x128xf32, #tpu.memory_space<vmem>>, vector<1x1x128xf32>
    %49 = vector.shape_cast %48 : vector<1x1x128xf32> to vector<1x128xf32>
    %50 = vector.shape_cast %47 : vector<1x128xf32> to vector<1x1x128xf32>
    tpu.vector_store %arg4[%c0_27, %c0_28, %c0_29], %50 {strides = array<i32>} : memref<1x2x128xf32, #tpu.memory_space<vmem>>, vector<1x1x128xf32>,
    %c0_30 = arith.constant 0 : index
    %c1_31 = arith.constant 1 : index
    %c0_32 = arith.constant 0 : index
    %51 = vector.load %arg4[%c0_30, %c1_31, %c0_32] : memref<1x2x128xf32, #tpu.memory_space<vmem>>, vector<1x1x128xf32>
    %52 = vector.shape_cast %51 : vector<1x1x128xf32> to vector<1x128xf32>
    %53 = vector.shape_cast %42 : vector<1x128xf32> to vector<1x1x128xf32>
    tpu.vector_store %arg4[%c0_30, %c1_31, %c0_32], %53 {strides = array<i32>} : memref<1x2x128xf32, #tpu.memory_space<vmem>>, vector<1x1x128xf32>,
    return
  }
  func.func @transform_0(%arg0: i32) -> (i32, i32, i32) {
    %c0_i32 = arith.constant 0 : i32
    %c0_i32_0 = arith.constant 0 : i32
    %c0_i32_1 = arith.constant 0 : i32
    return %c0_i32, %arg0, %c0_i32_0 : i32, i32, i32
  }
  func.func @transform_1(%arg0: i32) -> (i32, i32) {
    %c0_i32 = arith.constant 0 : i32
    %c0_i32_0 = arith.constant 0 : i32
    %c0_i32_1 = arith.constant 0 : i32
    return %c0_i32, %c0_i32_0 : i32, i32
  }
  func.func @transform_2(%arg0: i32) -> (i32, i32) {
    %c0_i32 = arith.constant 0 : i32
    %c0_i32_0 = arith.constant 0 : i32
    return %arg0, %c0_i32 : i32, i32
  }
  func.func @transform_3(%arg0: i32) -> (i32, i32, i32) {
    %c0_i32 = arith.constant 0 : i32
    %c0_i32_0 = arith.constant 0 : i32
    %c0_i32_1 = arith.constant 0 : i32
    return %arg0, %c0_i32, %c0_i32_0 : i32, i32, i32
  }
}

</mosaic_0001>

<llo_original>
// kernel: tpu_custom_call.1
$region0: #{tpu_custom_call.1}
  #allocation0 [shape = 'u32[]', space=smem, size = 0x4, offset = 0x4, fixed_abs, tag = 'smem constant byte address 0x4 - core index']
  #allocation1 [shape = 'u32[144,128]{1,0:T(1,128)}', space=vmem, size = 0x12000, scoped, tag = 'internal scratch']
  #allocation10 [shape = 's32[]', space=sflag, size = 0x4, offset = 0, fixed_abs, tag = 'sflag constant byte address 0x0 - dummy sync flag']
  %s0 = inlined_call_operand.hbm [shape: f32[4,128,128], index: 0, kind: input, shape index: {}]
  %s1 = inlined_call_operand.hbm [shape: f32[128,128], index: 1, kind: input, shape index: {}]
  %s2 = inlined_call_operand.hbm [shape: f32[128,128], index: 2, kind: output, shape index: {0}]
  %s3 = inlined_call_operand.hbm [shape: f32[4,2,128], index: 3, kind: output, shape index: {1}]
  %4 = xla_tuple %s2, %s3
  %s5 = sld [smem:[#allocation0]]
  $region57: #{tpu_custom_call.1} parent=0
    _
  %s7 = ssub.s32 1, %s5
  %s8 = scalar_select 0, %s7, %s5
  $region1: #{tpu_custom_call.1} parent=0
    #allocation2 [shape = 'u8[131072]{0}', space=vmem, size = 0x20000, scoped, tag = 'input window, operand 0']
    #allocation3 [shape = 's32[2]{0}', space=sflag, size = 0x8, scoped, tag = 'scoped memory for tpu_custom_call.1']
    #allocation4 [shape = 's32[2]{0}', space=sflag, size = 0x8, scoped, tag = 'scoped memory for tpu_custom_call.1']
    #allocation5 [shape = 'u8[65536]{0}', space=vmem, size = 0x10000, scoped, tag = 'input window, operand 1, single buffered']
    #allocation6 [shape = 's32[1]{0}', space=sflag, size = 0x4, scoped, tag = 'scoped memory for tpu_custom_call.1']
    #allocation7 [shape = 'u8[32768]{0}', space=vmem, size = 0x8000, scoped, tag = 'output window, operand 0']
    #allocation8 [shape = 'u8[2048]{0}', space=vmem, size = 0x800, scoped, tag = 'output window, operand 1']
    #allocation9 [shape = 's32[2]{0}', space=sflag, size = 0x8, scoped, tag = 'scoped memory for tpu_custom_call.1']
    %9 = vsyncpa [#allocation3], 0
    %s10 = scalar_lea.sflag [#allocation3], 1
    %11 = vsyncpa %s10, 0
    %12 = vsyncpa [#allocation6], 0
    %13 = vsyncpa [#allocation4], 0
    %s14 = scalar_lea.sflag [#allocation4], 1
    %15 = vsyncpa %s14, 0
    %16 = vsyncpa [#allocation9], 0
    %s17 = scalar_lea.sflag [#allocation9], 1
    %18 = vsyncpa %s17, 0
    loop: start=0, step=1, limit=6
    $region2: #{tpu_custom_call.1} parent=1 // loop_pre_header
      _
    $region3: #{tpu_custom_call.1} parent=1 // loop_header
      %s20 = sphi 0, %s24
      %p21 = scmp.ge.s32.totalorder %s20, 6
      %s30 = sphi 0, %s32
      %s33 = sphi 0, %s30
      %s34 = sphi 0, %s33
      %s50 = sphi 0, %s34
      %s54 = sphi 0, %s54
      %s56 = sphi 0, %s54
      %s57 = sphi 0, %s56
      %s71 = sphi 0, %s57
      %s77 = sphi 0, %s79
      %s80 = sphi 0, %s77
      %s81 = sphi 0, %s80
      %s97 = sphi 0, %s81
      %s103 = sphi 0, %s105
      %s106 = sphi 0, %s103
      %s107 = sphi 0, %s106
      %s123 = sphi 0, %s107
    $region4: #{tpu_custom_call.1} parent=1 // loop_header_branch
      %23 = sbr.rel (%p21) target = $region8
    $region5: #{tpu_custom_call.1} parent=1 // loop_body
      %s25 = ssub.s32 %s20, 1
      %s26 = ssub.s32 %s20, 2
      %s27 = sadd.s32 %s20, 1
      %s28 = ssub.s32 %s20, %s27
      %p29 = scmp.eq.s32.totalorder %s28, 0
      %s31 = sadd.s32 %s30, 1
      %s32 = scalar_select %p29, %s30, %s31
      %p35 = pneg %p29
      %p36 = scmp.eq.s32.totalorder %s20, 3
      %p37 = por %p35, %p36
      %p38 = scmp.ne.s32.totalorder %s30, %s33
      %p39 = scmp.eq.s32.totalorder %s20, 0
      %p40 = por %p38, %p39
      %p41 = scmp.ne.s32.totalorder %s30, %s33
      %p42 = scmp.eq.s32.totalorder %s25, 3
      %p43 = por %p41, %p42
      %p44 = scmp.ne.s32.totalorder %s33, %s34
      %p45 = scmp.eq.s32.totalorder %s25, 0
      %p46 = por %p44, %p45
      %p47 = scmp.ne.s32.totalorder %s33, %s34
      %p48 = scmp.eq.s32.totalorder %s26, 3
      %p49 = por %p47, %p48
      %p51 = scmp.ne.s32.totalorder %s34, %s50
      %p52 = scmp.eq.s32.totalorder %s26, 0
      %p53 = por %p51, %p52
      %s55 = sadd.s32 %s54, 1
      %p58 = scmp.eq.s32.totalorder %s20, 3
      %p59 = scmp.ne.s32.totalorder %s54, %s56
      %p60 = scmp.eq.s32.totalorder %s20, 0
      %p61 = por %p59, %p60
      %p62 = scmp.ne.s32.totalorder %s54, %s56
      %p63 = scmp.eq.s32.totalorder %s25, 3
      %p64 = por %p62, %p63
      %p65 = scmp.ne.s32.totalorder %s56, %s57
      %p66 = scmp.eq.s32.totalorder %s25, 0
      %p67 = por %p65, %p66
      %p68 = scmp.ne.s32.totalorder %s56, %s57
      %p69 = scmp.eq.s32.totalorder %s26, 3
      %p70 = por %p68, %p69
      %p72 = scmp.ne.s32.totalorder %s57, %s71
      %p73 = scmp.eq.s32.totalorder %s26, 0
      %p74 = por %p72, %p73
      %s75 = ssub.s32 %s20, %s27
      %p76 = scmp.eq.s32.totalorder %s75, 0
      %s78 = sadd.s32 %s77, 1
      %s79 = scalar_select %p76, %s77, %s78
      %p82 = pneg %p76
      %p83 = scmp.eq.s32.totalorder %s20, 3
      %p84 = por %p82, %p83
      %p85 = scmp.ne.s32.totalorder %s77, %s80
      %p86 = scmp.eq.s32.totalorder %s20, 0
      %p87 = por %p85, %p86
      %p88 = scmp.ne.s32.totalorder %s77, %s80
      %p89 = scmp.eq.s32.totalorder %s25, 3
      %p90 = por %p88, %p89
      %p91 = scmp.ne.s32.totalorder %s80, %s81
      %p92 = scmp.eq.s32.totalorder %s25, 0
      %p93 = por %p91, %p92
      %p94 = scmp.ne.s32.totalorder %s80, %s81
      %p95 = scmp.eq.s32.totalorder %s26, 3
      %p96 = por %p94, %p95
      %p98 = scmp.ne.s32.totalorder %s81, %s97
      %p99 = scmp.eq.s32.totalorder %s26, 0
      %p100 = por %p98, %p99
      %s101 = ssub.s32 %s20, %s27
      %p102 = scmp.eq.s32.totalorder %s101, 0
      %s104 = sadd.s32 %s103, 1
      %s105 = scalar_select %p102, %s103, %s104
      %p108 = pneg %p102
      %p109 = scmp.eq.s32.totalorder %s20, 3
      %p110 = por %p108, %p109
      %p111 = scmp.ne.s32.totalorder %s103, %s106
      %p112 = scmp.eq.s32.totalorder %s20, 0
      %p113 = por %p111, %p112
      %p114 = scmp.ne.s32.totalorder %s103, %s106
      %p115 = scmp.eq.s32.totalorder %s25, 3
      %p116 = por %p114, %p115
      %p117 = scmp.ne.s32.totalorder %s106, %s107
      %p118 = scmp.eq.s32.totalorder %s25, 0
      %p119 = por %p117, %p118
      %p120 = scmp.ne.s32.totalorder %s106, %s107
      %p121 = scmp.eq.s32.totalorder %s26, 3
      %p122 = por %p120, %p121
      %p124 = scmp.ne.s32.totalorder %s107, %s123
      %p125 = scmp.eq.s32.totalorder %s26, 0
      %p126 = por %p124, %p125
      %p127 = scmp.le.s32.totalorder 1, %s20
      %p128 = scmp.lt.s32.totalorder %s20, 5
      %p129 = pnand %p127, %p128
      %p130 = pneg %p129
      // Predicated region
      $region9: #{tpu_custom_call.1} parent=5 // pred_check
        _
      $region10: #{tpu_custom_call.1} parent=5 // pred_check_branch
        %132 = sbr.rel (%p129) target = $region12
      $region11: #{tpu_custom_call.1} parent=5 // pred_region
        %s133 = ssub.s32 %s20, 1
        // Predicated region
        $region13: #{tpu_custom_call.1} parent=11 // pred_check
          %p134 = pneg %p67
        $region14: #{tpu_custom_call.1} parent=11 // pred_check_branch
          %136 = sbr.rel (%p134) target = $region16
        $region15: #{tpu_custom_call.1} parent=11 // pred_region
          %s138 = ssub.s32 2048, 2048
          %139 = vsyncadd [#allocation6], %s138
          %s140 = sshll.u32 [#allocation5], 4
          %s141 = int_to_ptr.vmem [resolvable:$true] %s140
          %146 = dma.hbm_to_vmem [thread:$0]  %s1, 2048, %s141, [#allocation6], 128, 128, 8
        $region16: #{tpu_custom_call.1} parent=11 // pred_fallthru
          _
      $region12: #{tpu_custom_call.1} parent=5 // pred_fallthru
        _
      %p147 = scmp.lt.s32.totalorder %s20, 4
      // Predicated region
      $region17: #{tpu_custom_call.1} parent=5 // pred_check
        %p148 = pneg %p147
      $region18: #{tpu_custom_call.1} parent=5 // pred_check_branch
        %150 = sbr.rel (%p148) target = $region20
      $region19: #{tpu_custom_call.1} parent=5 // pred_region
        // Predicated region
        $region21: #{tpu_custom_call.1} parent=19 // pred_check
          %p151 = pneg %p40
        $region22: #{tpu_custom_call.1} parent=19 // pred_check_branch
          %153 = sbr.rel (%p151) target = $region24
        $region23: #{tpu_custom_call.1} parent=19 // pred_region
          #allocation11 [shape = 'u32[6]{0}', space=smem, size = 0x18, scoped, tag = 'DMA stride descriptor']
          %s154 = sand.u32 %s30, 1
          %s155 = scalar_lea.sflag [#allocation3], %s154
          %s156 = sand.u32 %s30, 1
          %s157 = smul.addr %s156, 128
          %s158 = scalar_lea.vmem [#allocation2], %s157
          %s159 = smul.u32 4, %s20
          %s161 = ssub.s32 2048, 2048
          %162 = vsyncadd %s155, %s161
          %s163 = smul.addr %s159, 128
          %s164 = scalar_lea.hbm %s0, %s163
          %s166 = sshll.u32 1, 14
          %s167 = sxor.u32 4294967295, %s166
          %s169 = sld [smem:[#allocation0]]
          %s170 = sadd.s32 2, %s169
          %s172 = sshll.u32 7, 26
          %s173 = sxor.u32 4294967295, %s172
          %s174 = sand.u32 0, %s173
          %s175 = sshll.u32 %s170, 26
          %s176 = sor.u32 %s174, %s175
          %s177 = sshll.u32 %s158, 4
          %s178 = int_to_ptr.vmem [resolvable:$true] %s177
          %184 = sst [smem:[#allocation11]] 2048
          %s185 = scalar_lea.smem [#allocation11], 1
          %186 = sst [smem:[%s185]] 512
          %s187 = scalar_lea.smem [#allocation11], 2
          %188 = sst [smem:[%s187]] 4
          %s189 = scalar_lea.smem [#allocation11], 3
          %190 = sst [smem:[%s189]] 128
          %s191 = scalar_lea.smem [#allocation11], 4
          %192 = sst [smem:[%s191]] 128
          %s193 = scalar_lea.smem [#allocation11], 5
          %194 = sst [smem:[%s193]] 8
          %196 = dma.general %s164, 2048, %s178, %s155, 131072, [#allocation11], %s176, 0
        $region24: #{tpu_custom_call.1} parent=19 // pred_fallthru
          _
      $region20: #{tpu_custom_call.1} parent=5 // pred_fallthru
        _
      %p197 = scmp.le.s32.totalorder 1, %s20
      %p198 = scmp.lt.s32.totalorder %s20, 5
      %p199 = pnand %p197, %p198
      %p200 = pneg %p199
      // Predicated region
      $region25: #{tpu_custom_call.1} parent=5 // pred_check
        _
      $region26: #{tpu_custom_call.1} parent=5 // pred_check_branch
        %202 = sbr.rel (%p199) target = $region28
      $region27: #{tpu_custom_call.1} parent=5 // pred_region
        %s203 = ssub.s32 %s20, 1
        %s204 = sand.u32 %s33, 1
        %s205 = scalar_lea.sflag [#allocation3], %s204
        %s206 = sand.u32 %s33, 1
        %s207 = smul.addr %s206, 128
        %s208 = scalar_lea.vmem [#allocation2], %s207
        // Predicated region
        $region29: #{tpu_custom_call.1} parent=27 // pred_check
          %p209 = pneg %p46
        $region30: #{tpu_custom_call.1} parent=27 // pred_check_branch
          %211 = sbr.rel (%p209) target = $region32
        $region31: #{tpu_custom_call.1} parent=27 // pred_region
          %212 = dma.done %s205, 2048
        $region32: #{tpu_custom_call.1} parent=27 // pred_fallthru
          _
        // Predicated region
        $region33: #{tpu_custom_call.1} parent=27 // pred_check
          %p213 = pneg %p67
        $region34: #{tpu_custom_call.1} parent=27 // pred_check_branch
          %215 = sbr.rel (%p213) target = $region36
        $region35: #{tpu_custom_call.1} parent=27 // pred_region
          %216 = dma.done [#allocation6], 2048
        $region36: #{tpu_custom_call.1} parent=27 // pred_fallthru
          _
        %s217 = sand.u32 %s33, 1
        %s218 = scalar_lea.sflag [#allocation3], %s217
        %s219 = sand.u32 %s33, 1
        %s220 = smul.addr %s219, 128
        %s221 = scalar_lea.vmem [#allocation2], %s220
        %p222 = pneg %p46
        %p223 = pneg %p43
        %p224 = pneg %p67
        %p225 = pneg %p64
        %p226 = pneg %p93
        %p227 = pneg %p90
        %s228 = sand.u32 %s80, 1
        %s229 = scalar_lea.sflag [#allocation4], %s228
        %s230 = sand.u32 %s80, 1
        %s231 = smul.addr %s230, 32
        %s232 = scalar_lea.vmem [#allocation7], %s231
        %p233 = pneg %p119
        %p234 = pneg %p116
        %s235 = sand.u32 %s106, 1
        %s236 = scalar_lea.sflag [#allocation9], %s235
        %s237 = sand.u32 %s106, 1
        %s238 = smul.addr %s237, 2
        %s239 = scalar_lea.vmem [#allocation8], %s238
        %s240 = smul.u32 4, %s25
        %s241 = smul.u32 4, %s25
        %v242 = vld [vmem:[#allocation5] sm:$0xff]
        %v243 = vld [vmem:[#allocation5 + $0x8] sm:$0xff]
        %v244 = vld [vmem:[#allocation5 + $0x10] sm:$0xff]
        %v245 = vld [vmem:[#allocation5 + $0x18] sm:$0xff]
        %v246 = vld [vmem:[#allocation5 + $0x20] sm:$0xff]
        %v247 = vld [vmem:[#allocation5 + $0x28] sm:$0xff]
        %v248 = vld [vmem:[#allocation5 + $0x30] sm:$0xff]
        %v249 = vld [vmem:[#allocation5 + $0x38] sm:$0xff]
        %v250 = vld [vmem:[#allocation5 + $0x40] sm:$0xff]
        %v251 = vld [vmem:[#allocation5 + $0x48] sm:$0xff]
        %v252 = vld [vmem:[#allocation5 + $0x50] sm:$0xff]
        %v253 = vld [vmem:[#allocation5 + $0x58] sm:$0xff]
        %v254 = vld [vmem:[#allocation5 + $0x60] sm:$0xff]
        %v255 = vld [vmem:[#allocation5 + $0x68] sm:$0xff]
        %v256 = vld [vmem:[#allocation5 + $0x70] sm:$0xff]
        %v257 = vld [vmem:[#allocation5 + $0x78] sm:$0xff]
        %v258 = vld [vmem:[%s208] sm:$0xff]
        %v259 = vld [vmem:[%s208 + $0x8] sm:$0xff]
        %v260 = vld [vmem:[%s208 + $0x10] sm:$0xff]
        %v261 = vld [vmem:[%s208 + $0x18] sm:$0xff]
        %262 = vmatprep.subr.mxu0 0.0
        %263 = vmatpush1.msra.mxu0 %v257
        %264 = vmatprep.subr.mxu0 0.0
        %265 = vmatpush1.msra.mxu0 %v256
        %266 = vmatprep.subr.mxu0 0.0
        %267 = vmatpush1.msra.mxu0 %v255
        %268 = vmatprep.subr.mxu0 0.0
        %269 = vmatpush1.msra.mxu0 %v254
        %270 = vmatprep.subr.mxu0 0.0
        %271 = vmatpush1.msra.mxu0 %v253
        %272 = vmatprep.subr.mxu0 0.0
        %273 = vmatpush1.msra.mxu0 %v252
        %274 = vmatprep.subr.mxu0 0.0
        %275 = vmatpush1.msra.mxu0 %v251
        %276 = vmatprep.subr.mxu0 0.0
        %277 = vmatpush1.msra.mxu0 %v250
        %278 = vmatprep.subr.mxu0 0.0
        %279 = vmatpush1.msra.mxu0 %v249
        %280 = vmatprep.subr.mxu0 0.0
        %281 = vmatpush1.msra.mxu0 %v248
        %282 = vmatprep.subr.mxu0 0.0
        %283 = vmatpush1.msra.mxu0 %v247
        %284 = vmatprep.subr.mxu0 0.0
        %285 = vmatpush1.msra.mxu0 %v246
        %286 = vmatprep.subr.mxu0 0.0
        %287 = vmatpush1.msra.mxu0 %v245
        %288 = vmatprep.subr.mxu0 0.0
        %289 = vmatpush1.msra.mxu0 %v244
        %290 = vmatprep.subr.mxu0 0.0
        %291 = vmatpush1.msra.mxu0 %v243
        %292 = vmatprep.subr.mxu0 0.0
        %293 = vmatpush1.msra.mxu0 %v242
        %294 = vmatprep.subr.mxu0 0.0
        %295 = vmatpush2.msra.mxu0 0.0
        %296 = vmatprep.subr.mxu0 0.0
        %297 = vmatpush2.msra.mxu0 0.0
        %298 = vmatprep.subr.mxu0 0.0
        %299 = vmatpush2.msra.mxu0 0.0
        %300 = vmatprep.subr.mxu0 0.0
        %301 = vmatpush2.msra.mxu0 0.0
        %302 = vmatprep.subr.mxu0 0.0
        %303 = vmatpush2.msra.mxu0 0.0
        %304 = vmatprep.subr.mxu0 0.0
        %305 = vmatpush2.msra.mxu0 0.0
        %306 = vmatprep.subr.mxu0 0.0
        %307 = vmatpush2.msra.mxu0 0.0
        %308 = vmatprep.subr.mxu0 0.0
        %309 = vmatpush2.msra.mxu0 0.0
        %310 = vmatprep.subr.mxu0 0.0
        %311 = vmatpush2.msra.mxu0 0.0
        %312 = vmatprep.subr.mxu0 0.0
        %313 = vmatpush2.msra.mxu0 0.0
        %314 = vmatprep.subr.mxu0 0.0
        %315 = vmatpush2.msra.mxu0 0.0
        %316 = vmatprep.subr.mxu0 0.0
        %317 = vmatpush2.msra.mxu0 0.0
        %318 = vmatprep.subr.mxu0 0.0
        %319 = vmatpush2.msra.mxu0 0.0
        %320 = vmatprep.subr.mxu0 0.0
        %321 = vmatpush2.msra.mxu0 0.0
        %322 = vmatprep.subr.mxu0 0.0
        %323 = vmatpush2.msra.mxu0 0.0
        %324 = vmatprep.subr.mxu0 0.0
        %325 = vmatpush2.msra.mxu0 0.0
        %326 = vmatprep.mubr.f32.mxu0 0.0
        %327 = vmatmul.mubr.f32.gmra.mxu0 %v258
        %v328 = vpop.f32.mrf.mxu0
        %v329 = vadd.f32 0.0, %v328
        %v330 = vpop.f32.mrf.mxu0
        %331 = vmatprep.mubr.f32.mxu0 0.0
        %332 = vmatmul.mubr.f32.gmra.mxu0 %v259
        %v333 = vpop.f32.mrf.mxu0
        %v334 = vadd.f32 0.0, %v333
        %v335 = vpop.f32.mrf.mxu0
        %336 = vmatprep.mubr.f32.mxu0 0.0
        %337 = vmatmul.mubr.f32.gmra.mxu0 %v260
        %v338 = vpop.f32.mrf.mxu0
        %v339 = vadd.f32 0.0, %v338
        %v340 = vpop.f32.mrf.mxu0
        %341 = vmatprep.mubr.f32.mxu0 0.0
        %342 = vmatmul.mubr.f32.gmra.mxu0 %v261
        %v343 = vpop.f32.mrf.mxu0
        %v344 = vadd.f32 0.0, %v343
        %v345 = vpop.f32.mrf.mxu0
        %346 = vdwg.mxu0
        %v347 = vmax.f32 %v329, 0.0
        %v348 = vmax.f32 %v334, 0.0
        %v349 = vmax.f32 %v339, 0.0
        %v350 = vmax.f32 %v344, 0.0
        %v351 = vadd.f32 %v347, 0.0
        %v352 = vadd.f32 %v348, 0.0
        %v353 = vadd.f32 %v349, 0.0
        %v354 = vadd.f32 %v350, 0.0
        %v355 = vmul.f32 %v347, %v347
        %v356 = vmul.f32 %v348, %v348
        %v357 = vmul.f32 %v349, %v349
        %v358 = vmul.f32 %v350, %v350
        %v359 = vadd.f32 %v355, %v356
        %v360 = vadd.f32 %v359, %v357
        %v361 = vadd.f32 %v360, %v358
        %v362 = vrot.slane %v361, 4
        %v363 = vadd.f32 %v361, %v362
        %v364 = vrot.slane %v363, 2
        %v365 = vadd.f32 %v363, %v364
        %v366 = vrot.slane %v365, 1
        %v367 = vadd.f32 %v365, %v366
        %v368 = vadd.f32 %v367, 0.0
        %s369 = scalar_lea.vmem %s208, 32 [#allocation2]
        %v370 = vld [vmem:[%s369] sm:$0xff]
        %v371 = vld [vmem:[%s369 + $0x8] sm:$0xff]
        %v372 = vld [vmem:[%s369 + $0x10] sm:$0xff]
        %v373 = vld [vmem:[%s369 + $0x18] sm:$0xff]
        %374 = vmatprep.subr.mxu0 0.0
        %375 = vmatpush1.msra.mxu0 %v257
        %376 = vmatprep.subr.mxu0 0.0
        %377 = vmatpush1.msra.mxu0 %v256
        %378 = vmatprep.subr.mxu0 0.0
        %379 = vmatpush1.msra.mxu0 %v255
        %380 = vmatprep.subr.mxu0 0.0
        %381 = vmatpush1.msra.mxu0 %v254
        %382 = vmatprep.subr.mxu0 0.0
        %383 = vmatpush1.msra.mxu0 %v253
        %384 = vmatprep.subr.mxu0 0.0
        %385 = vmatpush1.msra.mxu0 %v252
        %386 = vmatprep.subr.mxu0 0.0
        %387 = vmatpush1.msra.mxu0 %v251
        %388 = vmatprep.subr.mxu0 0.0
        %389 = vmatpush1.msra.mxu0 %v250
        %390 = vmatprep.subr.mxu0 0.0
        %391 = vmatpush1.msra.mxu0 %v249
        %392 = vmatprep.subr.mxu0 0.0
        %393 = vmatpush1.msra.mxu0 %v248
        %394 = vmatprep.subr.mxu0 0.0
        %395 = vmatpush1.msra.mxu0 %v247
        %396 = vmatprep.subr.mxu0 0.0
        %397 = vmatpush1.msra.mxu0 %v246
        %398 = vmatprep.subr.mxu0 0.0
        %399 = vmatpush1.msra.mxu0 %v245
        %400 = vmatprep.subr.mxu0 0.0
        %401 = vmatpush1.msra.mxu0 %v244
        %402 = vmatprep.subr.mxu0 0.0
        %403 = vmatpush1.msra.mxu0 %v243
        %404 = vmatprep.subr.mxu0 0.0
        %405 = vmatpush1.msra.mxu0 %v242
        %406 = vmatprep.subr.mxu0 0.0
        %407 = vmatpush2.msra.mxu0 0.0
        %408 = vmatprep.subr.mxu0 0.0
        %409 = vmatpush2.msra.mxu0 0.0
        %410 = vmatprep.subr.mxu0 0.0
        %411 = vmatpush2.msra.mxu0 0.0
        %412 = vmatprep.subr.mxu0 0.0
        %413 = vmatpush2.msra.mxu0 0.0
        %414 = vmatprep.subr.mxu0 0.0
        %415 = vmatpush2.msra.mxu0 0.0
        %416 = vmatprep.subr.mxu0 0.0
        %417 = vmatpush2.msra.mxu0 0.0
        %418 = vmatprep.subr.mxu0 0.0
        %419 = vmatpush2.msra.mxu0 0.0
        %420 = vmatprep.subr.mxu0 0.0
        %421 = vmatpush2.msra.mxu0 0.0
        %422 = vmatprep.subr.mxu0 0.0
        %423 = vmatpush2.msra.mxu0 0.0
        %424 = vmatprep.subr.mxu0 0.0
        %425 = vmatpush2.msra.mxu0 0.0
        %426 = vmatprep.subr.mxu0 0.0
        %427 = vmatpush2.msra.mxu0 0.0
        %428 = vmatprep.subr.mxu0 0.0
        %429 = vmatpush2.msra.mxu0 0.0
        %430 = vmatprep.subr.mxu0 0.0
        %431 = vmatpush2.msra.mxu0 0.0
        %432 = vmatprep.subr.mxu0 0.0
        %433 = vmatpush2.msra.mxu0 0.0
        %434 = vmatprep.subr.mxu0 0.0
        %435 = vmatpush2.msra.mxu0 0.0
        %436 = vmatprep.subr.mxu0 0.0
        %437 = vmatpush2.msra.mxu0 0.0
        %438 = vmatprep.mubr.f32.mxu0 0.0
        %439 = vmatmul.mubr.f32.gmra.mxu0 %v370
        %v440 = vpop.f32.mrf.mxu0
        %v441 = vadd.f32 0.0, %v440
        %v442 = vpop.f32.mrf.mxu0
        %443 = vmatprep.mubr.f32.mxu0 0.0
        %444 = vmatmul.mubr.f32.gmra.mxu0 %v371
        %v445 = vpop.f32.mrf.mxu0
        %v446 = vadd.f32 0.0, %v445
        %v447 = vpop.f32.mrf.mxu0
        %448 = vmatprep.mubr.f32.mxu0 0.0
        %449 = vmatmul.mubr.f32.gmra.mxu0 %v372
        %v450 = vpop.f32.mrf.mxu0
        %v451 = vadd.f32 0.0, %v450
        %v452 = vpop.f32.mrf.mxu0
        %453 = vmatprep.mubr.f32.mxu0 0.0
        %454 = vmatmul.mubr.f32.gmra.mxu0 %v373
        %v455 = vpop.f32.mrf.mxu0
        %v456 = vadd.f32 0.0, %v455
        %v457 = vpop.f32.mrf.mxu0
        %458 = vdwg.mxu0
        %v459 = vmax.f32 %v441, 0.0
        %v460 = vmax.f32 %v446, 0.0
        %v461 = vmax.f32 %v451, 0.0
        %v462 = vmax.f32 %v456, 0.0
        %v463 = vadd.f32 %v351, %v459
        %v464 = vadd.f32 %v352, %v460
        %v465 = vadd.f32 %v353, %v461
        %v466 = vadd.f32 %v354, %v462
        %v467 = vmul.f32 %v459, %v459
        %v468 = vmul.f32 %v460, %v460
        %v469 = vmul.f32 %v461, %v461
        %v470 = vmul.f32 %v462, %v462
        %v471 = vadd.f32 %v467, %v468
        %v472 = vadd.f32 %v471, %v469
        %v473 = vadd.f32 %v472, %v470
        %v474 = vrot.slane %v473, 4
        %v475 = vadd.f32 %v473, %v474
        %v476 = vrot.slane %v475, 2
        %v477 = vadd.f32 %v475, %v476
        %v478 = vrot.slane %v477, 1
        %v479 = vadd.f32 %v477, %v478
        %v480 = vadd.f32 %v368, %v479
        %s481 = scalar_lea.vmem %s208, 64 [#allocation2]
        %v482 = vld [vmem:[%s481] sm:$0xff]
        %v483 = vld [vmem:[%s481 + $0x8] sm:$0xff]
        %v484 = vld [vmem:[%s481 + $0x10] sm:$0xff]
        %v485 = vld [vmem:[%s481 + $0x18] sm:$0xff]
        %486 = vmatprep.subr.mxu0 0.0
        %487 = vmatpush1.msra.mxu0 %v257
        %488 = vmatprep.subr.mxu0 0.0
        %489 = vmatpush1.msra.mxu0 %v256
        %490 = vmatprep.subr.mxu0 0.0
        %491 = vmatpush1.msra.mxu0 %v255
        %492 = vmatprep.subr.mxu0 0.0
        %493 = vmatpush1.msra.mxu0 %v254
        %494 = vmatprep.subr.mxu0 0.0
        %495 = vmatpush1.msra.mxu0 %v253
        %496 = vmatprep.subr.mxu0 0.0
        %497 = vmatpush1.msra.mxu0 %v252
        %498 = vmatprep.subr.mxu0 0.0
        %499 = vmatpush1.msra.mxu0 %v251
        %500 = vmatprep.subr.mxu0 0.0
        %501 = vmatpush1.msra.mxu0 %v250
        %502 = vmatprep.subr.mxu0 0.0
        %503 = vmatpush1.msra.mxu0 %v249
        %504 = vmatprep.subr.mxu0 0.0
        %505 = vmatpush1.msra.mxu0 %v248
        %506 = vmatprep.subr.mxu0 0.0
        %507 = vmatpush1.msra.mxu0 %v247
        %508 = vmatprep.subr.mxu0 0.0
        %509 = vmatpush1.msra.mxu0 %v246
        %510 = vmatprep.subr.mxu0 0.0
        %511 = vmatpush1.msra.mxu0 %v245
        %512 = vmatprep.subr.mxu0 0.0
        %513 = vmatpush1.msra.mxu0 %v244
        %514 = vmatprep.subr.mxu0 0.0
        %515 = vmatpush1.msra.mxu0 %v243
        %516 = vmatprep.subr.mxu0 0.0
        %517 = vmatpush1.msra.mxu0 %v242
        %518 = vmatprep.subr.mxu0 0.0
        %519 = vmatpush2.msra.mxu0 0.0
        %520 = vmatprep.subr.mxu0 0.0
        %521 = vmatpush2.msra.mxu0 0.0
        %522 = vmatprep.subr.mxu0 0.0
        %523 = vmatpush2.msra.mxu0 0.0
        %524 = vmatprep.subr.mxu0 0.0
        %525 = vmatpush2.msra.mxu0 0.0
        %526 = vmatprep.subr.mxu0 0.0
        %527 = vmatpush2.msra.mxu0 0.0
        %528 = vmatprep.subr.mxu0 0.0
        %529 = vmatpush2.msra.mxu0 0.0
        %530 = vmatprep.subr.mxu0 0.0
        %531 = vmatpush2.msra.mxu0 0.0
        %532 = vmatprep.subr.mxu0 0.0
        %533 = vmatpush2.msra.mxu0 0.0
        %534 = vmatprep.subr.mxu0 0.0
        %535 = vmatpush2.msra.mxu0 0.0
        %536 = vmatprep.subr.mxu0 0.0
        %537 = vmatpush2.msra.mxu0 0.0
        %538 = vmatprep.subr.mxu0 0.0
        %539 = vmatpush2.msra.mxu0 0.0
        %540 = vmatprep.subr.mxu0 0.0
        %541 = vmatpush2.msra.mxu0 0.0
        %542 = vmatprep.subr.mxu0 0.0
        %543 = vmatpush2.msra.mxu0 0.0
        %544 = vmatprep.subr.mxu0 0.0
        %545 = vmatpush2.msra.mxu0 0.0
        %546 = vmatprep.subr.mxu0 0.0
        %547 = vmatpush2.msra.mxu0 0.0
        %548 = vmatprep.subr.mxu0 0.0
        %549 = vmatpush2.msra.mxu0 0.0
        %550 = vmatprep.mubr.f32.mxu0 0.0
        %551 = vmatmul.mubr.f32.gmra.mxu0 %v482
        %v552 = vpop.f32.mrf.mxu0
        %v553 = vadd.f32 0.0, %v552
        %v554 = vpop.f32.mrf.mxu0
        %555 = vmatprep.mubr.f32.mxu0 0.0
        %556 = vmatmul.mubr.f32.gmra.mxu0 %v483
        %v557 = vpop.f32.mrf.mxu0
        %v558 = vadd.f32 0.0, %v557
        %v559 = vpop.f32.mrf.mxu0
        %560 = vmatprep.mubr.f32.mxu0 0.0
        %561 = vmatmul.mubr.f32.gmra.mxu0 %v484
        %v562 = vpop.f32.mrf.mxu0
        %v563 = vadd.f32 0.0, %v562
        %v564 = vpop.f32.mrf.mxu0
        %565 = vmatprep.mubr.f32.mxu0 0.0
        %566 = vmatmul.mubr.f32.gmra.mxu0 %v485
        %v567 = vpop.f32.mrf.mxu0
        %v568 = vadd.f32 0.0, %v567
        %v569 = vpop.f32.mrf.mxu0
        %570 = vdwg.mxu0
        %v571 = vmax.f32 %v553, 0.0
        %v572 = vmax.f32 %v558, 0.0
        %v573 = vmax.f32 %v563, 0.0
        %v574 = vmax.f32 %v568, 0.0
        %v575 = vadd.f32 %v463, %v571
        %v576 = vadd.f32 %v464, %v572
        %v577 = vadd.f32 %v465, %v573
        %v578 = vadd.f32 %v466, %v574
        %v579 = vmul.f32 %v571, %v571
        %v580 = vmul.f32 %v572, %v572
        %v581 = vmul.f32 %v573, %v573
        %v582 = vmul.f32 %v574, %v574
        %v583 = vadd.f32 %v579, %v580
        %v584 = vadd.f32 %v583, %v581
        %v585 = vadd.f32 %v584, %v582
        %v586 = vrot.slane %v585, 4
        %v587 = vadd.f32 %v585, %v586
        %v588 = vrot.slane %v587, 2
        %v589 = vadd.f32 %v587, %v588
        %v590 = vrot.slane %v589, 1
        %v591 = vadd.f32 %v589, %v590
        %v592 = vadd.f32 %v480, %v591
        %s593 = scalar_lea.vmem %s208, 96 [#allocation2]
        %v594 = vld [vmem:[%s593] sm:$0xff]
        %v595 = vld [vmem:[%s593 + $0x8] sm:$0xff]
        %v596 = vld [vmem:[%s593 + $0x10] sm:$0xff]
        %v597 = vld [vmem:[%s593 + $0x18] sm:$0xff]
        %598 = vmatprep.subr.mxu0 0.0
        %599 = vmatpush1.msra.mxu0 %v257
        %600 = vmatprep.subr.mxu0 0.0
        %601 = vmatpush1.msra.mxu0 %v256
        %602 = vmatprep.subr.mxu0 0.0
        %603 = vmatpush1.msra.mxu0 %v255
        %604 = vmatprep.subr.mxu0 0.0
        %605 = vmatpush1.msra.mxu0 %v254
        %606 = vmatprep.subr.mxu0 0.0
        %607 = vmatpush1.msra.mxu0 %v253
        %608 = vmatprep.subr.mxu0 0.0
        %609 = vmatpush1.msra.mxu0 %v252
        %610 = vmatprep.subr.mxu0 0.0
        %611 = vmatpush1.msra.mxu0 %v251
        %612 = vmatprep.subr.mxu0 0.0
        %613 = vmatpush1.msra.mxu0 %v250
        %614 = vmatprep.subr.mxu0 0.0
        %615 = vmatpush1.msra.mxu0 %v249
        %616 = vmatprep.subr.mxu0 0.0
        %617 = vmatpush1.msra.mxu0 %v248
        %618 = vmatprep.subr.mxu0 0.0
        %619 = vmatpush1.msra.mxu0 %v247
        %620 = vmatprep.subr.mxu0 0.0
        %621 = vmatpush1.msra.mxu0 %v246
        %622 = vmatprep.subr.mxu0 0.0
        %623 = vmatpush1.msra.mxu0 %v245
        %624 = vmatprep.subr.mxu0 0.0
        %625 = vmatpush1.msra.mxu0 %v244
        %626 = vmatprep.subr.mxu0 0.0
        %627 = vmatpush1.msra.mxu0 %v243
        %628 = vmatprep.subr.mxu0 0.0
        %629 = vmatpush1.msra.mxu0 %v242
        %630 = vmatprep.subr.mxu0 0.0
        %631 = vmatpush2.msra.mxu0 0.0
        %632 = vmatprep.subr.mxu0 0.0
        %633 = vmatpush2.msra.mxu0 0.0
        %634 = vmatprep.subr.mxu0 0.0
        %635 = vmatpush2.msra.mxu0 0.0
        %636 = vmatprep.subr.mxu0 0.0
        %637 = vmatpush2.msra.mxu0 0.0
        %638 = vmatprep.subr.mxu0 0.0
        %639 = vmatpush2.msra.mxu0 0.0
        %640 = vmatprep.subr.mxu0 0.0
        %641 = vmatpush2.msra.mxu0 0.0
        %642 = vmatprep.subr.mxu0 0.0
        %643 = vmatpush2.msra.mxu0 0.0
        %644 = vmatprep.subr.mxu0 0.0
        %645 = vmatpush2.msra.mxu0 0.0
        %646 = vmatprep.subr.mxu0 0.0
        %647 = vmatpush2.msra.mxu0 0.0
        %648 = vmatprep.subr.mxu0 0.0
        %649 = vmatpush2.msra.mxu0 0.0
        %650 = vmatprep.subr.mxu0 0.0
        %651 = vmatpush2.msra.mxu0 0.0
        %652 = vmatprep.subr.mxu0 0.0
        %653 = vmatpush2.msra.mxu0 0.0
        %654 = vmatprep.subr.mxu0 0.0
        %655 = vmatpush2.msra.mxu0 0.0
        %656 = vmatprep.subr.mxu0 0.0
        %657 = vmatpush2.msra.mxu0 0.0
        %658 = vmatprep.subr.mxu0 0.0
        %659 = vmatpush2.msra.mxu0 0.0
        %660 = vmatprep.subr.mxu0 0.0
        %661 = vmatpush2.msra.mxu0 0.0
        %662 = vmatprep.mubr.f32.mxu0 0.0
        %663 = vmatmul.mubr.f32.gmra.mxu0 %v594
        %v664 = vpop.f32.mrf.mxu0
        %v665 = vadd.f32 0.0, %v664
        %v666 = vpop.f32.mrf.mxu0
        %667 = vmatprep.mubr.f32.mxu0 0.0
        %668 = vmatmul.mubr.f32.gmra.mxu0 %v595
        %v669 = vpop.f32.mrf.mxu0
        %v670 = vadd.f32 0.0, %v669
        %v671 = vpop.f32.mrf.mxu0
        %672 = vmatprep.mubr.f32.mxu0 0.0
        %673 = vmatmul.mubr.f32.gmra.mxu0 %v596
        %v674 = vpop.f32.mrf.mxu0
        %v675 = vadd.f32 0.0, %v674
        %v676 = vpop.f32.mrf.mxu0
        %677 = vmatprep.mubr.f32.mxu0 0.0
        %678 = vmatmul.mubr.f32.gmra.mxu0 %v597
        %v679 = vpop.f32.mrf.mxu0
        %v680 = vadd.f32 0.0, %v679
        %v681 = vpop.f32.mrf.mxu0
        %682 = vdwg.mxu0
        %v683 = vmax.f32 %v665, 0.0
        %v684 = vmax.f32 %v670, 0.0
        %v685 = vmax.f32 %v675, 0.0
        %v686 = vmax.f32 %v680, 0.0
        %v687 = vadd.f32 %v575, %v683
        %v688 = vadd.f32 %v576, %v684
        %v689 = vadd.f32 %v577, %v685
        %v690 = vadd.f32 %v578, %v686
        %v691 = vmul.f32 %v683, %v683
        %v692 = vmul.f32 %v684, %v684
        %v693 = vmul.f32 %v685, %v685
        %v694 = vmul.f32 %v686, %v686
        %v695 = vadd.f32 %v691, %v692
        %v696 = vadd.f32 %v695, %v693
        %v697 = vadd.f32 %v696, %v694
        %v698 = vrot.slane %v697, 4
        %v699 = vadd.f32 %v697, %v698
        %v700 = vrot.slane %v699, 2
        %v701 = vadd.f32 %v699, %v700
        %v702 = vrot.slane %v701, 1
        %v703 = vadd.f32 %v701, %v702
        %v704 = vadd.f32 %v592, %v703
        %v705 = vmul.f32 %v687, 0.25
        %v706 = vmul.f32 %v688, 0.25
        %v707 = vmul.f32 %v689, 0.25
        %v708 = vmul.f32 %v690, 0.25
        %709 = vst [vmem:[%s232] sm:$0xff] %v705
        %710 = vst [vmem:[%s232 + $0x8] sm:$0xff] %v706
        %711 = vst [vmem:[%s232 + $0x10] sm:$0xff] %v707
        %712 = vst [vmem:[%s232 + $0x18] sm:$0xff] %v708
        %v713 = vadd.f32 %v705, %v706
        %v714 = vadd.f32 %v713, %v707
        %v715 = vadd.f32 %v714, %v708
        %v716 = vrot.slane %v715, 4
        %v717 = vadd.f32 %v715, %v716
        %v718 = vrot.slane %v717, 2
        %v719 = vadd.f32 %v717, %v718
        %v720 = vrot.slane %v719, 1
        %v721 = vadd.f32 %v719, %v720
        %722 = vst [vmem:[%s239] sm:$0x1] %v721
        %723 = vst [vmem:[%s239 + $0x1] sm:$0x1] %v704
        %s724 = sand.u32 %s80, 1
        %s725 = scalar_lea.sflag [#allocation4], %s724
        %s726 = sand.u32 %s80, 1
        %s727 = smul.addr %s726, 32
        %s728 = scalar_lea.vmem [#allocation7], %s727
        %s729 = sand.u32 %s106, 1
        %s730 = scalar_lea.sflag [#allocation9], %s729
        %s731 = sand.u32 %s106, 1
        %s732 = smul.addr %s731, 2
        %s733 = scalar_lea.vmem [#allocation8], %s732
        // Predicated region
        $region37: #{tpu_custom_call.1} parent=27 // pred_check
          %p734 = pneg %p90
        $region38: #{tpu_custom_call.1} parent=27 // pred_check_branch
          %736 = sbr.rel (%p734) target = $region40
        $region39: #{tpu_custom_call.1} parent=27 // pred_region
          %s737 = smul.u32 4, %s25
          %s739 = ssub.s32 512, 512
          %740 = vsyncadd %s725, %s739
          %s741 = smul.addr %s737, 128
          %s742 = scalar_lea.hbm %s2, %s741
          %s743 = sshll.u32 %s728, 4
          %s744 = int_to_ptr.vmem [resolvable:$true] %s743
          %749 = dma.vmem_to_hbm [thread:$0]  %s744, 512, %s742, %s725, 128, 128, 8
        $region40: #{tpu_custom_call.1} parent=27 // pred_fallthru
          _
        // Predicated region
        $region41: #{tpu_custom_call.1} parent=27 // pred_check
          %p750 = pneg %p116
        $region42: #{tpu_custom_call.1} parent=27 // pred_check_branch
          %752 = sbr.rel (%p750) target = $region44
        $region43: #{tpu_custom_call.1} parent=27 // pred_region
          %s754 = ssub.s32 32, 32
          %755 = vsyncadd %s730, %s754
          %s756 = smul.addr %s25, 32
          %s757 = scalar_lea.hbm %s3, %s756
          %s759 = sshll.u32 %s733, 4
          %s760 = int_to_ptr.vmem [resolvable:$true] %s759
          %762 = dma.vmem_to_hbm [thread:$0]  %s760, 32, %s757, %s730
        $region44: #{tpu_custom_call.1} parent=27 // pred_fallthru
          _
      $region28: #{tpu_custom_call.1} parent=5 // pred_fallthru
        _
      %p763 = scmp.le.s32.totalorder 2, %s20
      // Predicated region
      $region45: #{tpu_custom_call.1} parent=5 // pred_check
        %p764 = pneg %p763
      $region46: #{tpu_custom_call.1} parent=5 // pred_check_branch
        %766 = sbr.rel (%p764) target = $region48
      $region47: #{tpu_custom_call.1} parent=5 // pred_region
        %s767 = ssub.s32 %s20, 2
        // Predicated region
        $region49: #{tpu_custom_call.1} parent=47 // pred_check
          %p768 = pneg %p96
        $region50: #{tpu_custom_call.1} parent=47 // pred_check_branch
          %770 = sbr.rel (%p768) target = $region52
        $region51: #{tpu_custom_call.1} parent=47 // pred_region
          %s771 = sand.u32 %s81, 1
          %s772 = scalar_lea.sflag [#allocation4], %s771
          %s773 = sand.u32 %s81, 1
          %s774 = smul.addr %s773, 32
          %s775 = scalar_lea.vmem [#allocation7], %s774
          %776 = dma.done %s772, 512
        $region52: #{tpu_custom_call.1} parent=47 // pred_fallthru
          _
        // Predicated region
        $region53: #{tpu_custom_call.1} parent=47 // pred_check
          %p777 = pneg %p122
        $region54: #{tpu_custom_call.1} parent=47 // pred_check_branch
          %779 = sbr.rel (%p777) target = $region56
        $region55: #{tpu_custom_call.1} parent=47 // pred_region
          %s780 = sand.u32 %s107, 1
          %s781 = scalar_lea.sflag [#allocation9], %s780
          %s782 = sand.u32 %s107, 1
          %s783 = smul.addr %s782, 2
          %s784 = scalar_lea.vmem [#allocation8], %s783
          %785 = dma.done %s781, 32
        $region56: #{tpu_custom_call.1} parent=47 // pred_fallthru
          _
      $region48: #{tpu_custom_call.1} parent=5 // pred_fallthru
        _
    $region6: #{tpu_custom_call.1} parent=1 // loop_footer
      %s24 = sadd.s32 1, %s20
    $region7: #{tpu_custom_call.1} parent=1 // loop_footer_branch
      %19 = sbr.rel target = $region3
    $region8: #{tpu_custom_call.1} parent=1 // loop_exit
      _
    %786 = vsyncpa [#allocation3], 1
    %s787 = scalar_lea.sflag [#allocation3], 1
    %788 = vsyncpa %s787, 1
    %789 = vsyncpa [#allocation6], 1
    %790 = vsyncpa [#allocation4], 1
    %s791 = scalar_lea.sflag [#allocation4], 1
    %792 = vsyncpa %s791, 1
    %793 = vsyncpa [#allocation9], 1
    %s794 = scalar_lea.sflag [#allocation9], 1
    %795 = vsyncpa %s794, 1

</llo_original>
